<compile_context>
chip_gen: v7x
topology: tpu7x:2x2x1
jax: 0.10.0
libtpu: 0.0.40
codegen_flags: <defaults>
</compile_context>

<pallas_src>
import math
import functools

import jax
import jax.numpy as jnp
import numpy as np
from jax import lax
from jax.experimental import pallas as pl
from jax.experimental.pallas import tpu as pltpu


# ---------------------------------------------------------------------------
# Generation-aware defaults.
# ---------------------------------------------------------------------------
def _chip_defaults():
    """(t_tile, vmem_limit_bytes, use_bf16_exp).

    256 tiles + bf16 exp on 256-wide-MXU chips (v6e / v7x); 128 tiles + f32
    softmax on v5e / unknown (conservative fallback)."""
    t_tile, vmem_limit, bf16_exp = 128, 32 * 1024 * 1024, False
    try:
        info = pltpu.get_tpu_info()
        version = ""
        for attr in ("chip_version", "version", "chip_name", "name"):
            if hasattr(info, attr):
                version = str(getattr(info, attr)).lower()
                break
        vmem_cap = int(getattr(info, "vmem_capacity_bytes", 128 * 1024 * 1024))
        if any(tag in version for tag in ("v6", "v7", "6e", "7x", "trillium")):
            t_tile = 256
            bf16_exp = True
            # Leave headroom below physical VMEM (v7x: 64 MiB/TC, v6e: 128 MiB).
            vmem_limit = int(min(96 * 1024 * 1024, (vmem_cap * 3) // 4))
    except Exception:
        pass
    return t_tile, vmem_limit, bf16_exp


# ---------------------------------------------------------------------------
# Kernel 1: fused Q/K/V projections (bf16 operands, f32 accumulate).
# K is stored transposed so kernel 2 never transposes in its hot loop.
# ---------------------------------------------------------------------------
def qkv_proj_kernel(x_ref, wq_ref, bq_ref, wk_ref, bk_ref, wv_ref, bv_ref,
                    q_ref, kT_ref, v_ref, *, scale):
    x = x_ref[0]                                                    # (Tt, C) bf16
    q = jnp.dot(x, wq_ref[...], preferred_element_type=jnp.float32) + bq_ref[...]
    k = jnp.dot(x, wk_ref[...], preferred_element_type=jnp.float32) + bk_ref[...]
    v = jnp.dot(x, wv_ref[...], preferred_element_type=jnp.float32) + bv_ref[...]
    q_ref[0] = (q * scale).astype(q_ref.dtype)      # fold 1/sqrt(D) into Q once
    # One XLU transpose per K tile here, amortized over every q tile later.
    kT_ref[0] = k.T.astype(kT_ref.dtype)            # (C, Tt)
    v_ref[0] = v.astype(v_ref.dtype)


# ---------------------------------------------------------------------------
# Kernel 2: flash-style causal attention (triangular grid) + fused out-proj.
# ---------------------------------------------------------------------------
def flash_attn_kernel(qi_tab, ki_tab,                       # scalar-prefetch SMEM
                      q_ref, kT_ref, v_ref, wp_ref, bp_ref,
                      o_ref, m_sc, l_sc, acc_sc,
                      *, n_heads, use_bf16_exp):
    step = pl.program_id(1)
    qi = qi_tab[step]
    ki = ki_tab[step]

    Tq = q_ref.shape[1]
    Tk = kT_ref.shape[2]
    C = q_ref.shape[2]
    D = C // n_heads

    @pl.when(ki == 0)
    def _init():
        m_sc[...] = jnp.full_like(m_sc, -jnp.inf)
        l_sc[...] = jnp.zeros_like(l_sc)
        acc_sc[...] = jnp.zeros_like(acc_sc)

    def attend(masked):
        q = q_ref[0]                        # (Tq, C) bf16, pre-scaled
        kT = kT_ref[0]                      # (C, Tk) bf16 (pre-transposed)
        v = v_ref[0]                        # (Tk, C) bf16

        if masked:                          # only the diagonal tile needs a mask
            row = lax.broadcasted_iota(jnp.int32, (Tq, Tk), 0)
            col = lax.broadcasted_iota(jnp.int32, (Tq, Tk), 1)
            allow = col <= row

        for h in range(n_heads):            # static lane/sublane slices
            sl = slice(h * D, (h + 1) * D)
            # scores: plain MXU matmul, no K transpose in the hot loop
            s = jnp.dot(q[:, sl], kT[sl, :],
                        preferred_element_type=jnp.float32)           # (Tq, Tk)
            if masked:
                s = jnp.where(allow, s, jnp.float32(-1e30))           # f32 mask

            m_prev = m_sc[:, h:h + 1]                                  # (Tq, 1)
            m_new = jnp.maximum(m_prev, jnp.max(s, axis=-1, keepdims=True))
            alpha = jnp.exp(m_prev - m_new)                            # f32
            if use_bf16_exp:
                # (s - m_new) <= 0 so the bf16 range is safe; stats stay f32.
                p = jnp.exp((s - m_new).astype(jnp.bfloat16))
                p_sum = jnp.sum(p.astype(jnp.float32), axis=-1, keepdims=True)
                pv = jnp.dot(p, v[:, sl], preferred_element_type=jnp.float32)
            else:
                p = jnp.exp(s - m_new)                                 # f32 EUP
                p_sum = jnp.sum(p, axis=-1, keepdims=True)
                pv = jnp.dot(p.astype(v.dtype), v[:, sl],
                             preferred_element_type=jnp.float32)       # (Tq, D)

            # Write straight into the per-head scratch slices: bounds the live
            # ranges to one head (no deferred concatenate / vreg spills).
            l_sc[:, h:h + 1] = alpha * l_sc[:, h:h + 1] + p_sum
            acc_sc[:, sl] = alpha * acc_sc[:, sl] + pv
            m_sc[:, h:h + 1] = m_new

    def finalize():
        inv_l = pl.reciprocal(l_sc[...], approx=True)                  # EUP slot
        for h in range(n_heads):
            sl = slice(h * D, (h + 1) * D)
            acc_sc[:, sl] = acc_sc[:, sl] * inv_l[:, h:h + 1]
        y = acc_sc[...].astype(jnp.bfloat16)                           # (Tq, C)
        out = jnp.dot(y, wp_ref[...],
                      preferred_element_type=jnp.float32) + bp_ref[...]
        o_ref[0] = out.astype(o_ref.dtype)

    @pl.when(ki != qi)           # strictly-below-diagonal tile: no mask work
    def _off_diag():
        attend(masked=False)

    @pl.when(ki == qi)           # diagonal tile: mask + finalize + fused proj
    def _diag():
        attend(masked=True)
        finalize()


# ---------------------------------------------------------------------------
# Wrapper
# ---------------------------------------------------------------------------
def multihead_self_attention(x, params, n_heads, *,
                             t_tile=None, vmem_limit_bytes=None,
                             use_bf16_exp=None):
    """x: (B, T, C) f32. params: (in, out) weights + (1, out) biases (f32)."""
    B, T, C = x.shape
    assert C % n_heads == 0
    D = C // n_heads
    scale = 1.0 / math.sqrt(D)

    d_tile, d_vmem, d_bf16 = _chip_defaults()
    t_tile = d_tile if t_tile is None else t_tile
    vmem_limit_bytes = d_vmem if vmem_limit_bytes is None else vmem_limit_bytes
    use_bf16_exp = d_bf16 if use_bf16_exp is None else use_bf16_exp

    tt = min(T, t_tile)
    assert T % tt == 0, "seq_len must be divisible by the time tile"
    n_t = T // tt

    # bf16 MXU operands (accumulation stays f32 inside the kernels).
    x_bf = x.astype(jnp.bfloat16)
    wq = params["wq"].astype(jnp.bfloat16)
    wk = params["wk"].astype(jnp.bfloat16)
    wv = params["wv"].astype(jnp.bfloat16)
    wp = params["wp"].astype(jnp.bfloat16)
    bq, bk, bv, bp = params["bq"], params["bk"], params["bv"], params["bp"]

    # Single-buffer the constant weight/bias blocks when double-buffering them
    # would crowd the VMEM limit (v7x / large-C case); small C keeps defaults.
    weight_db_bytes = 2 * (4 * C * C * 2 + 4 * C * 4)
    single_buffer_weights = weight_db_bytes > vmem_limit_bytes // 2
    # TODO(synk): for C >~ 2K on v7x (64 MiB VMEM/TC), additionally tile the
    # weight matrices over their output dim (extra grid axis) instead of
    # keeping full (C, C) blocks resident.

    def const_spec(shape, index_map):
        if single_buffer_weights:
            return pl.BlockSpec(shape, index_map, pipeline_mode=pl.Buffered(1))
        return pl.BlockSpec(shape, index_map)

    # --- Kernel 1: fused Q/K/V projections (K emitted pre-transposed) ------
    xt_spec = pl.BlockSpec((1, tt, C), lambda b, t: (b, t, 0))
    kT_spec = pl.BlockSpec((1, C, tt), lambda b, t: (b, 0, t))
    w_spec = const_spec((C, C), lambda b, t: (0, 0))
    b_spec = const_spec((1, C), lambda b, t: (0, 0))

    qkv_cost = pl.CostEstimate(
        flops=int(2 * 3 * B * T * C * C),
        transcendentals=0,
        bytes_accessed=int(B * T * C * 2 + 3 * (C * C * 2 + C * 4)
                           + 3 * B * T * C * 2),
    )
    q, kT, v = pl.pallas_call(
        functools.partial(qkv_proj_kernel, scale=scale),
        out_shape=(jax.ShapeDtypeStruct((B, T, C), jnp.bfloat16),
                   jax.ShapeDtypeStruct((B, C, T), jnp.bfloat16),
                   jax.ShapeDtypeStruct((B, T, C), jnp.bfloat16)),
        grid=(B, n_t),
        in_specs=[xt_spec, w_spec, b_spec, w_spec, b_spec, w_spec, b_spec],
        out_specs=(xt_spec, kT_spec, xt_spec),
        compiler_params=pltpu.CompilerParams(
            dimension_semantics=("parallel", "parallel"),
            vmem_limit_bytes=vmem_limit_bytes),
        cost_estimate=qkv_cost,
    )(x_bf, wq, bq, wk, bk, wv, bv)

    # --- Kernel 2: flash attention on a triangular grid + fused out-proj ---
    tq = tk = tt
    n_q = T // tq
    n_steps = n_q * (n_q + 1) // 2

    # Flattened lower-triangle (qi, ki <= qi) step tables, scalar-prefetched to
    # SMEM: no dead grid steps and no wasted K/V DMAs for the upper triangle.
    qi_list, ki_list = [], []
    for qi in range(n_q):
        for ki in range(qi + 1):
            qi_list.append(qi)
            ki_list.append(ki)
    qi_tab = jnp.asarray(qi_list, dtype=jnp.int32)
    ki_tab = jnp.asarray(ki_list, dtype=jnp.int32)

    attn_cost = pl.CostEstimate(
        flops=int(B * n_steps * 4 * tq * tk * C + 2 * B * T * C * C),
        transcendentals=int(B * n_steps * tq * tk * n_heads),
        bytes_accessed=int(3 * B * T * C * 2 + (C * C * 2 + C * 4)
                           + B * T * C * 4),
    )
    grid_spec = pltpu.PrefetchScalarGridSpec(
        num_scalar_prefetch=2,
        grid=(B, n_steps),
        in_specs=[
            pl.BlockSpec((1, tq, C), lambda b, s, qt, kt: (b, qt[s], 0)),   # q
            pl.BlockSpec((1, C, tk), lambda b, s, qt, kt: (b, 0, kt[s])),   # k^T
            pl.BlockSpec((1, tk, C), lambda b, s, qt, kt: (b, kt[s], 0)),   # v
            const_spec((C, C), lambda b, s, qt, kt: (0, 0)),                # Wp
            const_spec((1, C), lambda b, s, qt, kt: (0, 0)),                # bp
        ],
        out_specs=pl.BlockSpec((1, tq, C), lambda b, s, qt, kt: (b, qt[s], 0)),
        scratch_shapes=[
            pltpu.VMEM((tq, n_heads), jnp.float32),   # running row max  m
            pltpu.VMEM((tq, n_heads), jnp.float32),   # running denom    l
            pltpu.VMEM((tq, C), jnp.float32),         # output accumulator
        ],
    )
    out = pl.pallas_call(
        functools.partial(flash_attn_kernel, n_heads=n_heads,
                          use_bf16_exp=use_bf16_exp),
        out_shape=jax.ShapeDtypeStruct((B, T, C), x.dtype),
        grid_spec=grid_spec,
        compiler_params=pltpu.CompilerParams(
            dimension_semantics=("parallel", "arbitrary"),
            vmem_limit_bytes=vmem_limit_bytes),
        cost_estimate=attn_cost,
    )(qi_tab, ki_tab, q, kT, v, wp, bp)
    return out


# ---------------------------------------------------------------------------
# Pure-JAX reference matching the PyTorch module semantics (f32).
# ---------------------------------------------------------------------------
def reference_mhsa(x, params, n_heads):
    B, T, C = x.shape
    D = C // n_heads

    def lin(x, w, b):
        return x @ w + b[0]

    q = lin(x, params["wq"], params["bq"]).reshape(B, T, n_heads, D).transpose(0, 2, 1, 3)
    k = lin(x, params["wk"], params["bk"]).reshape(B, T, n_heads, D).transpose(0, 2, 1, 3)
    v = lin(x, params["wv"], params["bv"]).reshape(B, T, n_heads, D).transpose(0, 2, 1, 3)

    att = jnp.einsum('bhtd,bhsd->bhts', q, k) / math.sqrt(D)
    mask = jnp.tril(jnp.ones((T, T), dtype=bool))[None, None]
    att = jnp.where(mask, att, -jnp.inf)
    att = jax.nn.softmax(att, axis=-1)
    y = jnp.einsum('bhts,bhsd->bhtd', att, v)
    y = y.transpose(0, 2, 1, 3).reshape(B, T, C)
    return lin(y, params["wp"], params["bp"])


def init_params(key, embed_dim):
    """nn.Linear-like init. Weights stored (in, out); biases (1, out)."""
    bound = 1.0 / math.sqrt(embed_dim)
    keys = jax.random.split(key, 8)

    def w(k):
        return jax.random.uniform(k, (embed_dim, embed_dim), jnp.float32, -bound, bound)

    def b(k):
        return jax.random.uniform(k, (1, embed_dim), jnp.float32, -bound, bound)

    return {
        "wq": w(keys[0]), "bq": b(keys[1]),
        "wk": w(keys[2]), "bk": b(keys[3]),
        "wv": w(keys[4]), "bv": b(keys[5]),
        "wp": w(keys[6]), "bp": b(keys[7]),
    }


if __name__ == "__main__":
    # config: embed_dim=32, seq_len=8, n_heads=4; batch=2
    B, T, C, H = 2, 8, 32, 4

    key = jax.random.PRNGKey(0)
    kx, kp = jax.random.split(key)
    x = jax.random.normal(kx, (B, T, C), dtype=jnp.float32)
    params = init_params(kp, C)

    out = multihead_self_attention(x, params, n_heads=H)
    out = jax.block_until_ready(out)

    ref = reference_mhsa(x, params, n_heads=H)
    # bf16 MXU operands (+ optional bf16 exp) + approximate reciprocal =>
    # looser tolerance than pure f32.
    np.testing.assert_allclose(np.asarray(out), np.asarray(ref), atol=5e-2, rtol=5e-2)

    print("KERNEL_OK")
</pallas_src>

<mosaic_0001>
module attributes {stable_mosaic.version = 11 : i64} {
  func.func @qkv_proj_kernel(%arg0: i32, %arg1: i32, %arg2: memref<1x8x32xbf16, #tpu.memory_space<vmem>>, %arg3: memref<32x32xbf16, #tpu.memory_space<vmem>>, %arg4: memref<1x32xf32, #tpu.memory_space<vmem>>, %arg5: memref<32x32xbf16, #tpu.memory_space<vmem>>, %arg6: memref<1x32xf32, #tpu.memory_space<vmem>>, %arg7: memref<32x32xbf16, #tpu.memory_space<vmem>>, %arg8: memref<1x32xf32, #tpu.memory_space<vmem>>, %arg9: memref<1x8x32xbf16, #tpu.memory_space<vmem>>, %arg10: memref<1x32x8xbf16, #tpu.memory_space<vmem>>, %arg11: memref<1x8x32xbf16, #tpu.memory_space<vmem>>) attributes {dimension_semantics = [#tpu.dimension_semantics<parallel>, #tpu.dimension_semantics<parallel>], iteration_bounds = array<i64: 2, 1>, scalar_prefetch = 0 : i64, scratch_operands = 0 : i64, tpu.core_type = #tpu.core_type<tc>, window_params = [{transform_indices = @transform_0, window_bounds = array<i64: 1, 8, 32>}, {pipeline_mode = #tpu.pipeline_mode<synchronous>, transform_indices = @transform_1, window_bounds = array<i64: 32, 32>}, {pipeline_mode = #tpu.pipeline_mode<synchronous>, transform_indices = @transform_2, window_bounds = array<i64: 1, 32>}, {pipeline_mode = #tpu.pipeline_mode<synchronous>, transform_indices = @transform_3, window_bounds = array<i64: 32, 32>}, {pipeline_mode = #tpu.pipeline_mode<synchronous>, transform_indices = @transform_4, window_bounds = array<i64: 1, 32>}, {pipeline_mode = #tpu.pipeline_mode<synchronous>, transform_indices = @transform_5, window_bounds = array<i64: 32, 32>}, {pipeline_mode = #tpu.pipeline_mode<synchronous>, transform_indices = @transform_6, window_bounds = array<i64: 1, 32>}, {transform_indices = @transform_7, window_bounds = array<i64: 1, 8, 32>}, {transform_indices = @transform_8, window_bounds = array<i64: 1, 32, 8>}, {transform_indices = @transform_9, window_bounds = array<i64: 1, 8, 32>}]} {
    %c0 = arith.constant 0 : index
    %c0_0 = arith.constant 0 : index
    %c0_1 = arith.constant 0 : index
    %0 = vector.load %arg2[%c0, %c0_0, %c0_1] : memref<1x8x32xbf16, #tpu.memory_space<vmem>>, vector<1x8x32xbf16>
    %1 = vector.shape_cast %0 : vector<1x8x32xbf16> to vector<8x32xbf16>
    %c0_2 = arith.constant 0 : index
    %c0_3 = arith.constant 0 : index
    %2 = vector.load %arg3[%c0_2, %c0_3] : memref<32x32xbf16, #tpu.memory_space<vmem>>, vector<32x32xbf16>
    %cst = arith.constant dense<0.000000e+00> : vector<8x32xf32>
    %3 = tpu.matmul %1, %2, %cst {dimension_numbers = #tpu.dot_dimension_numbers<[1], [0], [0], [1], [0, 0, 1, 1], [], []>} : vector<8x32xbf16>, vector<32x32xbf16>, vector<8x32xf32> -> vector<8x32xf32>
    %c0_4 = arith.constant 0 : index
    %c0_5 = arith.constant 0 : index
    %4 = vector.load %arg4[%c0_4, %c0_5] : memref<1x32xf32, #tpu.memory_space<vmem>>, vector<1x32xf32>
    %5 = vector.broadcast %4 : vector<1x32xf32> to vector<8x32xf32>
    %6 = arith.addf %3, %5 : vector<8x32xf32>
    %c0_6 = arith.constant 0 : index
    %c0_7 = arith.constant 0 : index
    %7 = vector.load %arg5[%c0_6, %c0_7] : memref<32x32xbf16, #tpu.memory_space<vmem>>, vector<32x32xbf16>
    %cst_8 = arith.constant dense<0.000000e+00> : vector<8x32xf32>
    %8 = tpu.matmul %1, %7, %cst_8 {dimension_numbers = #tpu.dot_dimension_numbers<[1], [0], [0], [1], [0, 0, 1, 1], [], []>} : vector<8x32xbf16>, vector<32x32xbf16>, vector<8x32xf32> -> vector<8x32xf32>
    %c0_9 = arith.constant 0 : index
    %c0_10 = arith.constant 0 : index
    %9 = vector.load %arg6[%c0_9, %c0_10] : memref<1x32xf32, #tpu.memory_space<vmem>>, vector<1x32xf32>
    %10 = vector.broadcast %9 : vector<1x32xf32> to vector<8x32xf32>
    %11 = arith.addf %8, %10 : vector<8x32xf32>
    %c0_11 = arith.constant 0 : index
    %c0_12 = arith.constant 0 : index
    %12 = vector.load %arg7[%c0_11, %c0_12] : memref<32x32xbf16, #tpu.memory_space<vmem>>, vector<32x32xbf16>
    %cst_13 = arith.constant dense<0.000000e+00> : vector<8x32xf32>
    %13 = tpu.matmul %1, %12, %cst_13 {dimension_numbers = #tpu.dot_dimension_numbers<[1], [0], [0], [1], [0, 0, 1, 1], [], []>} : vector<8x32xbf16>, vector<32x32xbf16>, vector<8x32xf32> -> vector<8x32xf32>
    %c0_14 = arith.constant 0 : index
    %c0_15 = arith.constant 0 : index
    %14 = vector.load %arg8[%c0_14, %c0_15] : memref<1x32xf32, #tpu.memory_space<vmem>>, vector<1x32xf32>
    %15 = vector.broadcast %14 : vector<1x32xf32> to vector<8x32xf32>
    %16 = arith.addf %13, %15 : vector<8x32xf32>
    %cst_16 = arith.constant 0.353553385 : f32
    %17 = vector.broadcast %cst_16 : f32 to vector<8x32xf32>
    %18 = arith.mulf %6, %17 : vector<8x32xf32>
    %19 = arith.truncf %18 : vector<8x32xf32> to vector<8x32xbf16>
    %c0_17 = arith.constant 0 : index
    %c0_18 = arith.constant 0 : index
    %c0_19 = arith.constant 0 : index
    %20 = vector.load %arg9[%c0_17, %c0_18, %c0_19] : memref<1x8x32xbf16, #tpu.memory_space<vmem>>, vector<1x8x32xbf16>
    %21 = vector.shape_cast %20 : vector<1x8x32xbf16> to vector<8x32xbf16>
    %22 = vector.shape_cast %19 : vector<8x32xbf16> to vector<1x8x32xbf16>
    tpu.vector_store %arg9[%c0_17, %c0_18, %c0_19], %22 {strides = array<i32>} : memref<1x8x32xbf16, #tpu.memory_space<vmem>>, vector<1x8x32xbf16>,
    %23 = tpu.transpose %11, [1, 0] : vector<8x32xf32> -> vector<32x8xf32>
    %24 = arith.truncf %23 : vector<32x8xf32> to vector<32x8xbf16>
    %c0_20 = arith.constant 0 : index
    %c0_21 = arith.constant 0 : index
    %c0_22 = arith.constant 0 : index
    %25 = vector.load %arg10[%c0_20, %c0_21, %c0_22] : memref<1x32x8xbf16, #tpu.memory_space<vmem>>, vector<1x32x8xbf16>
    %26 = vector.shape_cast %25 : vector<1x32x8xbf16> to vector<32x8xbf16>
    %27 = vector.shape_cast %24 : vector<32x8xbf16> to vector<1x32x8xbf16>
    tpu.vector_store %arg10[%c0_20, %c0_21, %c0_22], %27 {strides = array<i32>} : memref<1x32x8xbf16, #tpu.memory_space<vmem>>, vector<1x32x8xbf16>,
    %28 = arith.truncf %16 : vector<8x32xf32> to vector<8x32xbf16>
    %c0_23 = arith.constant 0 : index
    %c0_24 = arith.constant 0 : index
    %c0_25 = arith.constant 0 : index
    %29 = vector.load %arg11[%c0_23, %c0_24, %c0_25] : memref<1x8x32xbf16, #tpu.memory_space<vmem>>, vector<1x8x32xbf16>
    %30 = vector.shape_cast %29 : vector<1x8x32xbf16> to vector<8x32xbf16>
    %31 = vector.shape_cast %28 : vector<8x32xbf16> to vector<1x8x32xbf16>
    tpu.vector_store %arg11[%c0_23, %c0_24, %c0_25], %31 {strides = array<i32>} : memref<1x8x32xbf16, #tpu.memory_space<vmem>>, vector<1x8x32xbf16>,
    return
  }
  func.func @transform_0(%arg0: i32, %arg1: i32) -> (i32, i32, i32) {
    %c0_i32 = arith.constant 0 : i32
    %c0_i32_0 = arith.constant 0 : i32
    return %arg0, %arg1, %c0_i32 : i32, i32, i32
  }
  func.func @transform_1(%arg0: i32, %arg1: i32) -> (i32, i32) {
    %c0_i32 = arith.constant 0 : i32
    %c0_i32_0 = arith.constant 0 : i32
    %c0_i32_1 = arith.constant 0 : i32
    return %c0_i32, %c0_i32_0 : i32, i32
  }
  func.func @transform_2(%arg0: i32, %arg1: i32) -> (i32, i32) {
    %c0_i32 = arith.constant 0 : i32
    %c0_i32_0 = arith.constant 0 : i32
    %c0_i32_1 = arith.constant 0 : i32
    return %c0_i32, %c0_i32_0 : i32, i32
  }
  func.func @transform_3(%arg0: i32, %arg1: i32) -> (i32, i32) {
    %c0_i32 = arith.constant 0 : i32
    %c0_i32_0 = arith.constant 0 : i32
    %c0_i32_1 = arith.constant 0 : i32
    return %c0_i32, %c0_i32_0 : i32, i32
  }
  func.func @transform_4(%arg0: i32, %arg1: i32) -> (i32, i32) {
    %c0_i32 = arith.constant 0 : i32
    %c0_i32_0 = arith.constant 0 : i32
    %c0_i32_1 = arith.constant 0 : i32
    return %c0_i32, %c0_i32_0 : i32, i32
  }
  func.func @transform_5(%arg0: i32, %arg1: i32) -> (i32, i32) {
    %c0_i32 = arith.constant 0 : i32
    %c0_i32_0 = arith.constant 0 : i32
    %c0_i32_1 = arith.constant 0 : i32
    return %c0_i32, %c0_i32_0 : i32, i32
  }
  func.func @transform_6(%arg0: i32, %arg1: i32) -> (i32, i32) {
    %c0_i32 = arith.constant 0 : i32
    %c0_i32_0 = arith.constant 0 : i32
    %c0_i32_1 = arith.constant 0 : i32
    return %c0_i32, %c0_i32_0 : i32, i32
  }
  func.func @transform_7(%arg0: i32, %arg1: i32) -> (i32, i32, i32) {
    %c0_i32 = arith.constant 0 : i32
    %c0_i32_0 = arith.constant 0 : i32
    return %arg0, %arg1, %c0_i32 : i32, i32, i32
  }
  func.func @transform_8(%arg0: i32, %arg1: i32) -> (i32, i32, i32) {
    %c0_i32 = arith.constant 0 : i32
    %c0_i32_0 = arith.constant 0 : i32
    return %arg0, %c0_i32, %arg1 : i32, i32, i32
  }
  func.func @transform_9(%arg0: i32, %arg1: i32) -> (i32, i32, i32) {
    %c0_i32 = arith.constant 0 : i32
    %c0_i32_0 = arith.constant 0 : i32
    return %arg0, %arg1, %c0_i32 : i32, i32, i32
  }
}

</mosaic_0001>

<llo_original>
// kernel: tpu_custom_call.1
$region0: #{tpu_custom_call.1}
  #allocation0 [shape = 'u32[]', space=smem, size = 0x4, offset = 0x4, fixed_abs, tag = 'smem constant byte address 0x4 - core index']
  #allocation1 [shape = 'u32[144,128]{1,0:T(1,128)}', space=vmem, size = 0x12000, scoped, tag = 'internal scratch']
  %s0 = inlined_call_operand.hbm [shape: bf16[2,8,32], index: 0, kind: input, shape index: {}]
  %s1 = inlined_call_operand.hbm [shape: bf16[32,32], index: 1, kind: input, shape index: {}]
  %s2 = inlined_call_operand.vmem [shape: f32[1,32], index: 2, kind: input, shape index: {}]
  %s3 = inlined_call_operand.hbm [shape: bf16[32,32], index: 3, kind: input, shape index: {}]
  %s4 = inlined_call_operand.vmem [shape: f32[1,32], index: 4, kind: input, shape index: {}]
  %s5 = inlined_call_operand.vmem [shape: bf16[32,32], index: 5, kind: input, shape index: {}]
  %s6 = inlined_call_operand.vmem [shape: f32[1,32], index: 6, kind: input, shape index: {}]
  %s7 = inlined_call_operand.hbm [shape: bf16[2,8,32], index: 7, kind: output, shape index: {0}]
  %s8 = inlined_call_operand.vmem [shape: bf16[2,32,8], index: 8, kind: output, shape index: {1}]
  %s9 = inlined_call_operand.hbm [shape: bf16[2,8,32], index: 9, kind: output, shape index: {2}]
  %10 = xla_tuple %s7, %s8, %s9
  %s11 = sld [smem:[#allocation0]]
  $region89: #{tpu_custom_call.1} parent=0
    _
  %s13 = ssub.s32 1, %s11
  %s14 = scalar_select 0, %s13, %s11
  $region1: #{tpu_custom_call.1} parent=0
    #allocation2 [shape = 'u8[4096]{0}', space=vmem, size = 0x1000, scoped, tag = 'input window, operand 0']
    #allocation3 [shape = 's32[2]{0}', space=sflag, size = 0x8, scoped, tag = 'scoped memory for tpu_custom_call.1']
    #allocation4 [shape = 's32[2]{0}', space=sflag, size = 0x8, scoped, tag = 'scoped memory for tpu_custom_call.1']
    #allocation5 [shape = 'u8[8192]{0}', space=vmem, size = 0x2000, scoped, tag = 'input window, operand 1, single buffered']
    #allocation6 [shape = 's32[1]{0}', space=sflag, size = 0x4, scoped, tag = 'scoped memory for tpu_custom_call.1']
    #allocation7 [shape = 'u8[8192]{0}', space=vmem, size = 0x2000, scoped, tag = 'input window, operand 3, single buffered']
    #allocation8 [shape = 'u8[4096]{0}', space=vmem, size = 0x1000, scoped, tag = 'output window, operand 0']
    #allocation9 [shape = 'u8[4096]{0}', space=vmem, size = 0x1000, scoped, tag = 'output window, operand 2']
    #allocation10 [shape = 's32[2]{0}', space=sflag, size = 0x8, scoped, tag = 'scoped memory for tpu_custom_call.1']
    %15 = vsyncpa [#allocation3], 0
    %s16 = scalar_lea.sflag [#allocation3], 1
    %17 = vsyncpa %s16, 0
    %18 = vsyncpa [#allocation6], 0
    %19 = vsyncpa [#allocation4], 0
    %s20 = scalar_lea.sflag [#allocation4], 1
    %21 = vsyncpa %s20, 0
    %22 = vsyncpa [#allocation10], 0
    %s23 = scalar_lea.sflag [#allocation10], 1
    %24 = vsyncpa %s23, 0
    loop: start=0, step=1, limit=4
    $region2: #{tpu_custom_call.1} parent=1 // loop_pre_header
      _
    $region3: #{tpu_custom_call.1} parent=1 // loop_header
      %s26 = sphi 0, %s30
      %p27 = scmp.ge.s32.totalorder %s26, 4
      %s33 = sphi 0, %s45
      %s34 = sphi 0, %s41
      %s35 = sphi 0, %s33
      %s36 = sphi 0, %s34
      %s37 = sphi 0, %s35
      %s38 = sphi 0, %s36
      %s50 = sphi 0, %s52
      %s53 = sphi 0, %s50
      %s54 = sphi 0, %s53
      %s70 = sphi 0, %s54
      %s74 = sphi 0, %s74
      %s76 = sphi 0, %s74
      %s77 = sphi 0, %s76
      %s91 = sphi 0, %s77
      %s95 = sphi 0, %s95
      %s97 = sphi 0, %s95
      %s98 = sphi 0, %s97
      %s112 = sphi 0, %s98
      %s116 = sphi 0, %s116
      %s118 = sphi 0, %s116
      %s119 = sphi 0, %s118
      %s133 = sphi 0, %s119
      %s137 = sphi 0, %s137
      %s139 = sphi 0, %s137
      %s140 = sphi 0, %s139
      %s154 = sphi 0, %s140
      %s158 = sphi 0, %s158
      %s160 = sphi 0, %s158
      %s161 = sphi 0, %s160
      %s175 = sphi 0, %s161
      %s179 = sphi 0, %s179
      %s181 = sphi 0, %s179
      %s182 = sphi 0, %s181
      %s196 = sphi 0, %s182
      %s204 = sphi 0, %s206
      %s207 = sphi 0, %s204
      %s208 = sphi 0, %s207
      %s224 = sphi 0, %s208
      %s232 = sphi 0, %s234
      %s235 = sphi 0, %s232
      %s236 = sphi 0, %s235
      %s252 = sphi 0, %s236
      %s260 = sphi 0, %s262
      %s263 = sphi 0, %s260
      %s264 = sphi 0, %s263
      %s280 = sphi 0, %s264
    $region4: #{tpu_custom_call.1} parent=1 // loop_header_branch
      %29 = sbr.rel (%p27) target = $region8
    $region5: #{tpu_custom_call.1} parent=1 // loop_body
      %s31 = ssub.s32 %s26, 1
      %s32 = ssub.s32 %s26, 2
      %s39 = sadd.s32 1, %s34
      %p40 = scmp.ge.s32.totalorder %s39, 1
      %s41 = scalar_select %p40, 0, %s39
      %s42 = sadd.s32 1, %s33
      %s43 = scalar_select %p40, %s42, %s33
      %p44 = scmp.ge.s32.totalorder %s43, 2
      %s45 = scalar_select %p44, 0, %s43
      %s46 = ssub.s32 %s33, %s45
      %s47 = ssub.s32 %s34, %s41
      %s48 = sor.u32 %s46, %s47
      %p49 = scmp.eq.s32.totalorder %s48, 0
      %s51 = sadd.s32 %s50, 1
      %s52 = scalar_select %p49, %s50, %s51
      %p55 = pneg %p49
      %p56 = scmp.eq.s32.totalorder %s26, 1
      %p57 = por %p55, %p56
      %p58 = scmp.ne.s32.totalorder %s50, %s53
      %p59 = scmp.eq.s32.totalorder %s26, 0
      %p60 = por %p58, %p59
      %p61 = scmp.ne.s32.totalorder %s50, %s53
      %p62 = scmp.eq.s32.totalorder %s31, 1
      %p63 = por %p61, %p62
      %p64 = scmp.ne.s32.totalorder %s53, %s54
      %p65 = scmp.eq.s32.totalorder %s31, 0
      %p66 = por %p64, %p65
      %p67 = scmp.ne.s32.totalorder %s53, %s54
      %p68 = scmp.eq.s32.totalorder %s32, 1
      %p69 = por %p67, %p68
      %p71 = scmp.ne.s32.totalorder %s54, %s70
      %p72 = scmp.eq.s32.totalorder %s32, 0
      %p73 = por %p71, %p72
      %s75 = sadd.s32 %s74, 1
      %p78 = scmp.eq.s32.totalorder %s26, 1
      %p79 = scmp.ne.s32.totalorder %s74, %s76
      %p80 = scmp.eq.s32.totalorder %s26, 0
      %p81 = por %p79, %p80
      %p82 = scmp.ne.s32.totalorder %s74, %s76
      %p83 = scmp.eq.s32.totalorder %s31, 1
      %p84 = por %p82, %p83
      %p85 = scmp.ne.s32.totalorder %s76, %s77
      %p86 = scmp.eq.s32.totalorder %s31, 0
      %p87 = por %p85, %p86
      %p88 = scmp.ne.s32.totalorder %s76, %s77
      %p89 = scmp.eq.s32.totalorder %s32, 1
      %p90 = por %p88, %p89
      %p92 = scmp.ne.s32.totalorder %s77, %s91
      %p93 = scmp.eq.s32.totalorder %s32, 0
      %p94 = por %p92, %p93
      %s96 = sadd.s32 %s95, 1
      %p99 = scmp.eq.s32.totalorder %s26, 1
      %p100 = scmp.ne.s32.totalorder %s95, %s97
      %p101 = scmp.eq.s32.totalorder %s26, 0
      %p102 = por %p100, %p101
      %p103 = scmp.ne.s32.totalorder %s95, %s97
      %p104 = scmp.eq.s32.totalorder %s31, 1
      %p105 = por %p103, %p104
      %p106 = scmp.ne.s32.totalorder %s97, %s98
      %p107 = scmp.eq.s32.totalorder %s31, 0
      %p108 = por %p106, %p107
      %p109 = scmp.ne.s32.totalorder %s97, %s98
      %p110 = scmp.eq.s32.totalorder %s32, 1
      %p111 = por %p109, %p110
      %p113 = scmp.ne.s32.totalorder %s98, %s112
      %p114 = scmp.eq.s32.totalorder %s32, 0
      %p115 = por %p113, %p114
      %s117 = sadd.s32 %s116, 1
      %p120 = scmp.eq.s32.totalorder %s26, 1
      %p121 = scmp.ne.s32.totalorder %s116, %s118
      %p122 = scmp.eq.s32.totalorder %s26, 0
      %p123 = por %p121, %p122
      %p124 = scmp.ne.s32.totalorder %s116, %s118
      %p125 = scmp.eq.s32.totalorder %s31, 1
      %p126 = por %p124, %p125
      %p127 = scmp.ne.s32.totalorder %s118, %s119
      %p128 = scmp.eq.s32.totalorder %s31, 0
      %p129 = por %p127, %p128
      %p130 = scmp.ne.s32.totalorder %s118, %s119
      %p131 = scmp.eq.s32.totalorder %s32, 1
      %p132 = por %p130, %p131
      %p134 = scmp.ne.s32.totalorder %s119, %s133
      %p135 = scmp.eq.s32.totalorder %s32, 0
      %p136 = por %p134, %p135
      %s138 = sadd.s32 %s137, 1
      %p141 = scmp.eq.s32.totalorder %s26, 1
      %p142 = scmp.ne.s32.totalorder %s137, %s139
      %p143 = scmp.eq.s32.totalorder %s26, 0
      %p144 = por %p142, %p143
      %p145 = scmp.ne.s32.totalorder %s137, %s139
      %p146 = scmp.eq.s32.totalorder %s31, 1
      %p147 = por %p145, %p146
      %p148 = scmp.ne.s32.totalorder %s139, %s140
      %p149 = scmp.eq.s32.totalorder %s31, 0
      %p150 = por %p148, %p149
      %p151 = scmp.ne.s32.totalorder %s139, %s140
      %p152 = scmp.eq.s32.totalorder %s32, 1
      %p153 = por %p151, %p152
      %p155 = scmp.ne.s32.totalorder %s140, %s154
      %p156 = scmp.eq.s32.totalorder %s32, 0
      %p157 = por %p155, %p156
      %s159 = sadd.s32 %s158, 1
      %p162 = scmp.eq.s32.totalorder %s26, 1
      %p163 = scmp.ne.s32.totalorder %s158, %s160
      %p164 = scmp.eq.s32.totalorder %s26, 0
      %p165 = por %p163, %p164
      %p166 = scmp.ne.s32.totalorder %s158, %s160
      %p167 = scmp.eq.s32.totalorder %s31, 1
      %p168 = por %p166, %p167
      %p169 = scmp.ne.s32.totalorder %s160, %s161
      %p170 = scmp.eq.s32.totalorder %s31, 0
      %p171 = por %p169, %p170
      %p172 = scmp.ne.s32.totalorder %s160, %s161
      %p173 = scmp.eq.s32.totalorder %s32, 1
      %p174 = por %p172, %p173
      %p176 = scmp.ne.s32.totalorder %s161, %s175
      %p177 = scmp.eq.s32.totalorder %s32, 0
      %p178 = por %p176, %p177
      %s180 = sadd.s32 %s179, 1
      %p183 = scmp.eq.s32.totalorder %s26, 1
      %p184 = scmp.ne.s32.totalorder %s179, %s181
      %p185 = scmp.eq.s32.totalorder %s26, 0
      %p186 = por %p184, %p185
      %p187 = scmp.ne.s32.totalorder %s179, %s181
      %p188 = scmp.eq.s32.totalorder %s31, 1
      %p189 = por %p187, %p188
      %p190 = scmp.ne.s32.totalorder %s181, %s182
      %p191 = scmp.eq.s32.totalorder %s31, 0
      %p192 = por %p190, %p191
      %p193 = scmp.ne.s32.totalorder %s181, %s182
      %p194 = scmp.eq.s32.totalorder %s32, 1
      %p195 = por %p193, %p194
      %p197 = scmp.ne.s32.totalorder %s182, %s196
      %p198 = scmp.eq.s32.totalorder %s32, 0
      %p199 = por %p197, %p198
      %s200 = ssub.s32 %s33, %s45
      %s201 = ssub.s32 %s34, %s41
      %s202 = sor.u32 %s200, %s201
      %p203 = scmp.eq.s32.totalorder %s202, 0
      %s205 = sadd.s32 %s204, 1
      %s206 = scalar_select %p203, %s204, %s205
      %p209 = pneg %p203
      %p210 = scmp.eq.s32.totalorder %s26, 1
      %p211 = por %p209, %p210
      %p212 = scmp.ne.s32.totalorder %s204, %s207
      %p213 = scmp.eq.s32.totalorder %s26, 0
      %p214 = por %p212, %p213
      %p215 = scmp.ne.s32.totalorder %s204, %s207
      %p216 = scmp.eq.s32.totalorder %s31, 1
      %p217 = por %p215, %p216
      %p218 = scmp.ne.s32.totalorder %s207, %s208
      %p219 = scmp.eq.s32.totalorder %s31, 0
      %p220 = por %p218, %p219
      %p221 = scmp.ne.s32.totalorder %s207, %s208
      %p222 = scmp.eq.s32.totalorder %s32, 1
      %p223 = por %p221, %p222
      %p225 = scmp.ne.s32.totalorder %s208, %s224
      %p226 = scmp.eq.s32.totalorder %s32, 0
      %p227 = por %p225, %p226
      %s228 = ssub.s32 %s33, %s45
      %s229 = ssub.s32 %s34, %s41
      %s230 = sor.u32 %s228, %s229
      %p231 = scmp.eq.s32.totalorder %s230, 0
      %s233 = sadd.s32 %s232, 1
      %s234 = scalar_select %p231, %s232, %s233
      %p237 = pneg %p231
      %p238 = scmp.eq.s32.totalorder %s26, 1
      %p239 = por %p237, %p238
      %p240 = scmp.ne.s32.totalorder %s232, %s235
      %p241 = scmp.eq.s32.totalorder %s26, 0
      %p242 = por %p240, %p241
      %p243 = scmp.ne.s32.totalorder %s232, %s235
      %p244 = scmp.eq.s32.totalorder %s31, 1
      %p245 = por %p243, %p244
      %p246 = scmp.ne.s32.totalorder %s235, %s236
      %p247 = scmp.eq.s32.totalorder %s31, 0
      %p248 = por %p246, %p247
      %p249 = scmp.ne.s32.totalorder %s235, %s236
      %p250 = scmp.eq.s32.totalorder %s32, 1
      %p251 = por %p249, %p250
      %p253 = scmp.ne.s32.totalorder %s236, %s252
      %p254 = scmp.eq.s32.totalorder %s32, 0
      %p255 = por %p253, %p254
      %s256 = ssub.s32 %s33, %s45
      %s257 = ssub.s32 %s34, %s41
      %s258 = sor.u32 %s256, %s257
      %p259 = scmp.eq.s32.totalorder %s258, 0
      %s261 = sadd.s32 %s260, 1
      %s262 = scalar_select %p259, %s260, %s261
      %p265 = pneg %p259
      %p266 = scmp.eq.s32.totalorder %s26, 1
      %p267 = por %p265, %p266
      %p268 = scmp.ne.s32.totalorder %s260, %s263
      %p269 = scmp.eq.s32.totalorder %s26, 0
      %p270 = por %p268, %p269
      %p271 = scmp.ne.s32.totalorder %s260, %s263
      %p272 = scmp.eq.s32.totalorder %s31, 1
      %p273 = por %p271, %p272
      %p274 = scmp.ne.s32.totalorder %s263, %s264
      %p275 = scmp.eq.s32.totalorder %s31, 0
      %p276 = por %p274, %p275
      %p277 = scmp.ne.s32.totalorder %s263, %s264
      %p278 = scmp.eq.s32.totalorder %s32, 1
      %p279 = por %p277, %p278
      %p281 = scmp.ne.s32.totalorder %s264, %s280
      %p282 = scmp.eq.s32.totalorder %s32, 0
      %p283 = por %p281, %p282
      %p284 = scmp.le.s32.totalorder 1, %s26
      %p285 = scmp.lt.s32.totalorder %s26, 3
      %p286 = pnand %p284, %p285
      %p287 = pneg %p286
      // Predicated region
      $region9: #{tpu_custom_call.1} parent=5 // pred_check
        _
      $region10: #{tpu_custom_call.1} parent=5 // pred_check_branch
        %289 = sbr.rel (%p286) target = $region12
      $region11: #{tpu_custom_call.1} parent=5 // pred_region
        %s290 = ssub.s32 %s26, 1
        // Predicated region
        $region13: #{tpu_custom_call.1} parent=11 // pred_check
          %p291 = pneg %p87
        $region14: #{tpu_custom_call.1} parent=11 // pred_check_branch
          %293 = sbr.rel (%p291) target = $region16
        $region15: #{tpu_custom_call.1} parent=11 // pred_region
          %s295 = ssub.s32 256, 256
          %296 = vsyncadd [#allocation6], %s295
          %s297 = sshll.u32 [#allocation5], 4
          %s298 = int_to_ptr.vmem [resolvable:$true] %s297
          %303 = dma.hbm_to_vmem [thread:$0]  %s1, 256, %s298, [#allocation6], 64, 64, 4
        $region16: #{tpu_custom_call.1} parent=11 // pred_fallthru
          _
        // Predicated region
        $region17: #{tpu_custom_call.1} parent=11 // pred_check
          %p304 = pneg %p108
        $region18: #{tpu_custom_call.1} parent=11 // pred_check_branch
          %306 = sbr.rel (%p304) target = $region20
        $region19: #{tpu_custom_call.1} parent=11 // pred_region
          _
        $region20: #{tpu_custom_call.1} parent=11 // pred_fallthru
          _
        // Predicated region
        $region21: #{tpu_custom_call.1} parent=11 // pred_check
          %p307 = pneg %p129
        $region22: #{tpu_custom_call.1} parent=11 // pred_check_branch
          %309 = sbr.rel (%p307) target = $region24
        $region23: #{tpu_custom_call.1} parent=11 // pred_region
          %s311 = ssub.s32 256, 256
          %312 = vsyncadd [#allocation6], %s311
          %s313 = sshll.u32 [#allocation7], 4
          %s314 = int_to_ptr.vmem [resolvable:$true] %s313
          %319 = dma.hbm_to_vmem [thread:$0]  %s3, 256, %s314, [#allocation6], 64, 64, 4
        $region24: #{tpu_custom_call.1} parent=11 // pred_fallthru
          _
        // Predicated region
        $region25: #{tpu_custom_call.1} parent=11 // pred_check
          %p320 = pneg %p150
        $region26: #{tpu_custom_call.1} parent=11 // pred_check_branch
          %322 = sbr.rel (%p320) target = $region28
        $region27: #{tpu_custom_call.1} parent=11 // pred_region
          _
        $region28: #{tpu_custom_call.1} parent=11 // pred_fallthru
          _
        // Predicated region
        $region29: #{tpu_custom_call.1} parent=11 // pred_check
          %p323 = pneg %p171
        $region30: #{tpu_custom_call.1} parent=11 // pred_check_branch
          %325 = sbr.rel (%p323) target = $region32
        $region31: #{tpu_custom_call.1} parent=11 // pred_region
          _
        $region32: #{tpu_custom_call.1} parent=11 // pred_fallthru
          _
        // Predicated region
        $region33: #{tpu_custom_call.1} parent=11 // pred_check
          %p326 = pneg %p192
        $region34: #{tpu_custom_call.1} parent=11 // pred_check_branch
          %328 = sbr.rel (%p326) target = $region36
        $region35: #{tpu_custom_call.1} parent=11 // pred_region
          _
        $region36: #{tpu_custom_call.1} parent=11 // pred_fallthru
          _
      $region12: #{tpu_custom_call.1} parent=5 // pred_fallthru
        _
      %p329 = scmp.lt.s32.totalorder %s26, 2
      // Predicated region
      $region37: #{tpu_custom_call.1} parent=5 // pred_check
        %p330 = pneg %p329
      $region38: #{tpu_custom_call.1} parent=5 // pred_check_branch
        %332 = sbr.rel (%p330) target = $region40
      $region39: #{tpu_custom_call.1} parent=5 // pred_region
        // Predicated region
        $region41: #{tpu_custom_call.1} parent=39 // pred_check
          %p333 = pneg %p60
        $region42: #{tpu_custom_call.1} parent=39 // pred_check_branch
          %335 = sbr.rel (%p333) target = $region44
        $region43: #{tpu_custom_call.1} parent=39 // pred_region
          %s336 = sand.u32 %s50, 1
          %s337 = scalar_lea.sflag [#allocation3], %s336
          %s338 = sand.u32 %s50, 1
          %s339 = smul.addr %s338, 4
          %s340 = scalar_lea.vmem [#allocation2], %s339
          %s342 = ssub.s32 64, 64
          %343 = vsyncadd %s337, %s342
          %s344 = sadd.s32 %s34, %s33
          %s345 = smul.addr %s344, 64
          %s346 = scalar_lea.hbm %s0, %s345
          %s348 = sshll.u32 %s340, 4
          %s349 = int_to_ptr.vmem [resolvable:$true] %s348
          %351 = dma.hbm_to_vmem [thread:$0]  %s346, 64, %s349, %s337
        $region44: #{tpu_custom_call.1} parent=39 // pred_fallthru
          _
      $region40: #{tpu_custom_call.1} parent=5 // pred_fallthru
        _
      %p352 = scmp.le.s32.totalorder 1, %s26
      %p353 = scmp.lt.s32.totalorder %s26, 3
      %p354 = pnand %p352, %p353
      %p355 = pneg %p354
      // Predicated region
      $region45: #{tpu_custom_call.1} parent=5 // pred_check
        _
      $region46: #{tpu_custom_call.1} parent=5 // pred_check_branch
        %357 = sbr.rel (%p354) target = $region48
      $region47: #{tpu_custom_call.1} parent=5 // pred_region
        %s358 = ssub.s32 %s26, 1
        %s359 = sand.u32 %s53, 1
        %s360 = scalar_lea.sflag [#allocation3], %s359
        %s361 = sand.u32 %s53, 1
        %s362 = smul.addr %s361, 4
        %s363 = scalar_lea.vmem [#allocation2], %s362
        // Predicated region
        $region49: #{tpu_custom_call.1} parent=47 // pred_check
          %p364 = pneg %p66
        $region50: #{tpu_custom_call.1} parent=47 // pred_check_branch
          %366 = sbr.rel (%p364) target = $region52
        $region51: #{tpu_custom_call.1} parent=47 // pred_region
          %367 = dma.done %s360, 64
        $region52: #{tpu_custom_call.1} parent=47 // pred_fallthru
          _
        // Predicated region
        $region53: #{tpu_custom_call.1} parent=47 // pred_check
          %p368 = pneg %p87
        $region54: #{tpu_custom_call.1} parent=47 // pred_check_branch
          %370 = sbr.rel (%p368) target = $region56
        $region55: #{tpu_custom_call.1} parent=47 // pred_region
          %371 = dma.done [#allocation6], 256
        $region56: #{tpu_custom_call.1} parent=47 // pred_fallthru
          _
        // Predicated region
        $region57: #{tpu_custom_call.1} parent=47 // pred_check
          %p372 = pneg %p129
        $region58: #{tpu_custom_call.1} parent=47 // pred_check_branch
          %374 = sbr.rel (%p372) target = $region60
        $region59: #{tpu_custom_call.1} parent=47 // pred_region
          %375 = dma.done [#allocation6], 256
        $region60: #{tpu_custom_call.1} parent=47 // pred_fallthru
          _
        %s376 = sand.u32 %s53, 1
        %s377 = scalar_lea.sflag [#allocation3], %s376
        %s378 = sand.u32 %s53, 1
        %s379 = smul.addr %s378, 4
        %s380 = scalar_lea.vmem [#allocation2], %s379
        %p381 = pneg %p66
        %p382 = pneg %p63
        %p383 = pneg %p87
        %p384 = pneg %p84
        %p385 = pneg %p108
        %p386 = pneg %p105
        %p387 = pneg %p129
        %p388 = pneg %p126
        %p389 = pneg %p150
        %p390 = pneg %p147
        %p391 = pneg %p171
        %p392 = pneg %p168
        %p393 = pneg %p192
        %p394 = pneg %p189
        %p395 = pneg %p220
        %p396 = pneg %p217
        %s397 = sand.u32 %s207, 1
        %s398 = scalar_lea.sflag [#allocation4], %s397
        %s399 = sand.u32 %s207, 1
        %s400 = smul.addr %s399, 4
        %s401 = scalar_lea.vmem [#allocation8], %s400
        %p402 = pneg %p248
        %p403 = pneg %p245
        %p404 = scmp.lt.s32.totalorder %s35, 1
        %s405 = scalar_select %p404, %s35, 1
        %p406 = scmp.lt.s32.totalorder %s36, 0
        %s407 = scalar_select %p406, %s36, 0
        %s408 = smul.addr %s405, 4
        %s409 = sadd.s32 %s407, %s408
        %s410 = smul.addr %s409, 4
        %s411 = scalar_lea.vmem %s8, %s410
        %p412 = pneg %p276
        %p413 = pneg %p273
        %s414 = sand.u32 %s263, 1
        %s415 = scalar_lea.sflag [#allocation10], %s414
        %s416 = sand.u32 %s263, 1
        %s417 = smul.addr %s416, 4
        %s418 = scalar_lea.vmem [#allocation9], %s417
        %p419 = scmp.lt.s32.totalorder %s35, 1
        %s420 = scalar_select %p419, %s35, 1
        %p421 = scmp.lt.s32.totalorder %s36, 0
        %s422 = scalar_select %p421, %s36, 0
        %s423 = smul.addr %s420, 4
        %s424 = sadd.s32 %s422, %s423
        %s425 = smul.addr %s424, 4
        %s426 = scalar_lea.vmem %s8, %s425
        %v428 = vld [vmem:[%s363] sm:$0xf]
        %v429 = vld [vmem:[#allocation5] sm:$0xf]
        %v430 = vld [vmem:[#allocation5 + $0x4] sm:$0xf]
        %v431 = vld [vmem:[#allocation5 + $0x8] sm:$0xf]
        %v432 = vld [vmem:[#allocation5 + $0xc] sm:$0xf]
        %v433 = vld [vmem:[%s2] sm:$0x1]
        %v435 = vlaneseq
        %v436 = vshrl.u32 %v435, 7
        %v437 = vsub.s32 0, %v436
        %v438 = vrot.slane %v433, %v437
        %v444 = vunpack.c.l.b16 %v429
        %v445 = vunpack.c.l.b16 %v430
        %v446 = vunpack.c.l.b16 %v431
        %v447 = vunpack.c.l.b16 %v432
        %v448 = vpack.c.b16 %v445, %v444
        %v449 = vpack.c.b16 %v447, %v446
        %vm452 = vcmask 261120
        %v454 = vsel %vm452, %v428, 0
        %456 = vmatprep.subr.bf16.mxu0 0
        %457 = vmatpush1.bf16.msra.mxu0 %v448
        %458 = vmatprep.subr.bf16.mxu0 0
        %459 = vmatpush1.bf16.msra.mxu0 %v449
        %460 = vmatprep.subr.bf16.mxu0 0
        %461 = vmatpush1.bf16.msra.mxu0 0
        %462 = vmatprep.subr.bf16.mxu0 0
        %463 = vmatpush1.bf16.msra.mxu0 0
        %464 = vmatprep.subr.bf16.mxu0 0
        %465 = vmatpush1.bf16.msra.mxu0 0
        %466 = vmatprep.subr.bf16.mxu0 0
        %467 = vmatpush1.bf16.msra.mxu0 0
        %468 = vmatprep.subr.bf16.mxu0 0
        %469 = vmatpush1.bf16.msra.mxu0 0
        %470 = vmatprep.subr.bf16.mxu0 0
        %471 = vmatpush1.bf16.msra.mxu0 0
        %472 = vmatprep.subr.bf16.mxu0 0
        %473 = vmatpush1.bf16.msra.mxu0 0
        %474 = vmatprep.subr.bf16.mxu0 0
        %475 = vmatpush1.bf16.msra.mxu0 0
        %476 = vmatprep.subr.bf16.mxu0 0
        %477 = vmatpush1.bf16.msra.mxu0 0
        %478 = vmatprep.subr.bf16.mxu0 0
        %479 = vmatpush1.bf16.msra.mxu0 0
        %480 = vmatprep.subr.bf16.mxu0 0
        %481 = vmatpush1.bf16.msra.mxu0 0
        %482 = vmatprep.subr.bf16.mxu0 0
        %483 = vmatpush1.bf16.msra.mxu0 0
        %484 = vmatprep.subr.bf16.mxu0 0
        %485 = vmatpush1.bf16.msra.mxu0 0
        %486 = vmatprep.subr.bf16.mxu0 0
        %487 = vmatpush1.bf16.msra.mxu0 0
        %488 = vmatprep.mubr.bf16.mxu0 0
        %489 = vmatmul.mubr.bf16.gmra.mrb[0].mxu0 %v454
        %v490 = vpop.f32.mrb[0].mxu0
        %v491 = vadd.f32 %v438, %v490
        %v492 = vpop.f32.mrb[0].mxu0
        %v493 = vpop.f32.mrb[0].mxu0
        %v494 = vpop.f32.mrb[0].mxu0
        %495 = vdwg.mxu0
        %v496 = vld [vmem:[#allocation7] sm:$0xf]
        %v497 = vld [vmem:[#allocation7 + $0x4] sm:$0xf]
        %v498 = vld [vmem:[#allocation7 + $0x8] sm:$0xf]
        %v499 = vld [vmem:[#allocation7 + $0xc] sm:$0xf]
        %v500 = vld [vmem:[%s4] sm:$0x1]
        %v502 = vlaneseq
        %v503 = vshrl.u32 %v502, 7
        %v504 = vsub.s32 0, %v503
        %v505 = vrot.slane %v500, %v504
        %v511 = vunpack.c.l.b16 %v496
        %v512 = vunpack.c.l.b16 %v497
        %v513 = vunpack.c.l.b16 %v498
        %v514 = vunpack.c.l.b16 %v499
        %v515 = vpack.c.b16 %v512, %v511
        %v516 = vpack.c.b16 %v514, %v513
        %519 = vmatprep.subr.bf16.mxu0 0
        %520 = vmatpush1.bf16.msra.mxu0 %v515
        %521 = vmatprep.subr.bf16.mxu0 0
        %522 = vmatpush1.bf16.msra.mxu0 %v516
        %523 = vmatprep.subr.bf16.mxu0 0
        %524 = vmatpush1.bf16.msra.mxu0 0
        %525 = vmatprep.subr.bf16.mxu0 0
        %526 = vmatpush1.bf16.msra.mxu0 0
        %527 = vmatprep.subr.bf16.mxu0 0
        %528 = vmatpush1.bf16.msra.mxu0 0
        %529 = vmatprep.subr.bf16.mxu0 0
        %530 = vmatpush1.bf16.msra.mxu0 0
        %531 = vmatprep.subr.bf16.mxu0 0
        %532 = vmatpush1.bf16.msra.mxu0 0
        %533 = vmatprep.subr.bf16.mxu0 0
        %534 = vmatpush1.bf16.msra.mxu0 0
        %535 = vmatprep.subr.bf16.mxu0 0
        %536 = vmatpush1.bf16.msra.mxu0 0
        %537 = vmatprep.subr.bf16.mxu0 0
        %538 = vmatpush1.bf16.msra.mxu0 0
        %539 = vmatprep.subr.bf16.mxu0 0
        %540 = vmatpush1.bf16.msra.mxu0 0
        %541 = vmatprep.subr.bf16.mxu0 0
        %542 = vmatpush1.bf16.msra.mxu0 0
        %543 = vmatprep.subr.bf16.mxu0 0
        %544 = vmatpush1.bf16.msra.mxu0 0
        %545 = vmatprep.subr.bf16.mxu0 0
        %546 = vmatpush1.bf16.msra.mxu0 0
        %547 = vmatprep.subr.bf16.mxu0 0
        %548 = vmatpush1.bf16.msra.mxu0 0
        %549 = vmatprep.subr.bf16.mxu0 0
        %550 = vmatpush1.bf16.msra.mxu0 0
        %551 = vmatprep.mubr.bf16.mxu0 0
        %552 = vmatmul.mubr.bf16.gmra.mrb[0].mxu0 %v454
        %v553 = vpop.f32.mrb[0].mxu0
        %v554 = vadd.f32 %v505, %v553
        %v555 = vpop.f32.mrb[0].mxu0
        %v556 = vpop.f32.mrb[0].mxu0
        %v557 = vpop.f32.mrb[0].mxu0
        %558 = vdwg.mxu0
        %v559 = vld [vmem:[%s5] sm:$0xf]
        %v560 = vld [vmem:[%s5 + $0x4] sm:$0xf]
        %v561 = vld [vmem:[%s5 + $0x8] sm:$0xf]
        %v562 = vld [vmem:[%s5 + $0xc] sm:$0xf]
        %v563 = vld [vmem:[%s6] sm:$0x1]
        %v565 = vlaneseq
        %v566 = vshrl.u32 %v565, 7
        %v567 = vsub.s32 0, %v566
        %v568 = vrot.slane %v563, %v567
        %v574 = vunpack.c.l.b16 %v559
        %v575 = vunpack.c.l.b16 %v560
        %v576 = vunpack.c.l.b16 %v561
        %v577 = vunpack.c.l.b16 %v562
        %v578 = vpack.c.b16 %v575, %v574
        %v579 = vpack.c.b16 %v577, %v576
        %582 = vmatprep.subr.bf16.mxu0 0
        %583 = vmatpush1.bf16.msra.mxu0 %v578
        %584 = vmatprep.subr.bf16.mxu0 0
        %585 = vmatpush1.bf16.msra.mxu0 %v579
        %586 = vmatprep.subr.bf16.mxu0 0
        %587 = vmatpush1.bf16.msra.mxu0 0
        %588 = vmatprep.subr.bf16.mxu0 0
        %589 = vmatpush1.bf16.msra.mxu0 0
        %590 = vmatprep.subr.bf16.mxu0 0
        %591 = vmatpush1.bf16.msra.mxu0 0
        %592 = vmatprep.subr.bf16.mxu0 0
        %593 = vmatpush1.bf16.msra.mxu0 0
        %594 = vmatprep.subr.bf16.mxu0 0
        %595 = vmatpush1.bf16.msra.mxu0 0
        %596 = vmatprep.subr.bf16.mxu0 0
        %597 = vmatpush1.bf16.msra.mxu0 0
        %598 = vmatprep.subr.bf16.mxu0 0
        %599 = vmatpush1.bf16.msra.mxu0 0
        %600 = vmatprep.subr.bf16.mxu0 0
        %601 = vmatpush1.bf16.msra.mxu0 0
        %602 = vmatprep.subr.bf16.mxu0 0
        %603 = vmatpush1.bf16.msra.mxu0 0
        %604 = vmatprep.subr.bf16.mxu0 0
        %605 = vmatpush1.bf16.msra.mxu0 0
        %606 = vmatprep.subr.bf16.mxu0 0
        %607 = vmatpush1.bf16.msra.mxu0 0
        %608 = vmatprep.subr.bf16.mxu0 0
        %609 = vmatpush1.bf16.msra.mxu0 0
        %610 = vmatprep.subr.bf16.mxu0 0
        %611 = vmatpush1.bf16.msra.mxu0 0
        %612 = vmatprep.subr.bf16.mxu0 0
        %613 = vmatpush1.bf16.msra.mxu0 0
        %614 = vmatprep.mubr.bf16.mxu0 0
        %615 = vmatmul.mubr.bf16.gmra.mrb[0].mxu0 %v454
        %v616 = vpop.f32.mrb[0].mxu0
        %v617 = vadd.f32 %v568, %v616
        %v618 = vpop.f32.mrb[0].mxu0
        %v619 = vpop.f32.mrb[0].mxu0
        %v620 = vpop.f32.mrb[0].mxu0
        %621 = vdwg.mxu0
        %v622 = vmul.f32 %v491, 0.35355338
        %v623 = vpack.c.bf16 %v622, %v622
        %vm624 = vcmask 257024
        %625 = vst.msk [vmem:[%s401] sm:$0xf] %vm624, %v623
        %626 = vxpose.xlu0.b32.start [1/16] %v554, 128
        %627 = vxpose.xlu0.b32.cont [2/16] 0.0, 128
        %628 = vxpose.xlu0.b32.cont [3/16] 0.0, 128
        %629 = vxpose.xlu0.b32.cont [4/16] 0.0, 128
        %630 = vxpose.xlu0.b32.cont [5/16] 0.0, 128
        %631 = vxpose.xlu0.b32.cont [6/16] 0.0, 128
        %632 = vxpose.xlu0.b32.cont [7/16] 0.0, 128
        %633 = vxpose.xlu0.b32.cont [8/16] 0.0, 128
        %634 = vxpose.xlu0.b32.cont [9/16] 0.0, 128
        %635 = vxpose.xlu0.b32.cont [10/16] 0.0, 128
        %636 = vxpose.xlu0.b32.cont [11/16] 0.0, 128
        %637 = vxpose.xlu0.b32.cont [12/16] 0.0, 128
        %638 = vxpose.xlu0.b32.cont [13/16] 0.0, 128
        %639 = vxpose.xlu0.b32.cont [14/16] 0.0, 128
        %640 = vxpose.xlu0.b32.cont [15/16] 0.0, 128
        %641 = vxpose.xlu0.b32.end [16/16] 0.0, 128
        %v642 = vpop.trf.xlu0
        %v643 = vpop.trf.xlu0
        %v644 = vpop.trf.xlu0
        %v645 = vpop.trf.xlu0
        %v646 = vpop.trf.xlu0
        %v647 = vpop.trf.xlu0
        %v648 = vpop.trf.xlu0
        %v649 = vpop.trf.xlu0
        %v650 = vpop.trf.xlu0
        %v651 = vpop.trf.xlu0
        %v652 = vpop.trf.xlu0
        %v653 = vpop.trf.xlu0
        %v654 = vpop.trf.xlu0
        %v655 = vpop.trf.xlu0
        %v656 = vpop.trf.xlu0
        %v657 = vpop.trf.xlu0
        %v658 = vpack.c.bf16 %v643, %v642
        %v659 = vpack.c.bf16 %v645, %v644
        %v662 = vunpack.c.l.b16 %v658
        %v663 = vunpack.c.h.b16 %v658
        %v664 = vunpack.c.l.b16 %v659
        %v665 = vunpack.c.h.b16 %v659
        %v666 = vpack.c.b16 %v662, %v662
        %v667 = vpack.c.b16 %v663, %v663
        %v668 = vpack.c.b16 %v664, %v664
        %v669 = vpack.c.b16 %v665, %v665
        %vm674 = vcmask 60416
        %675 = vst.msk [vmem:[%s426] sm:$0xf] %vm674, %v666
        %676 = vst.msk [vmem:[%s426 + $0x4] sm:$0xf] %vm674, %v667
        %677 = vst.msk [vmem:[%s426 + $0x8] sm:$0xf] %vm674, %v668
        %678 = vst.msk [vmem:[%s426 + $0xc] sm:$0xf] %vm674, %v669
        %v679 = vpack.c.bf16 %v617, %v617
        %680 = vst.msk [vmem:[%s418] sm:$0xf] %vm624, %v679
        %s681 = sand.u32 %s207, 1
        %s682 = scalar_lea.sflag [#allocation4], %s681
        %s683 = sand.u32 %s207, 1
        %s684 = smul.addr %s683, 4
        %s685 = scalar_lea.vmem [#allocation8], %s684
        %p686 = scmp.lt.s32.totalorder %s35, 1
        %s687 = scalar_select %p686, %s35, 1
        %p688 = scmp.lt.s32.totalorder %s36, 0
        %s689 = scalar_select %p688, %s36, 0
        %s690 = smul.addr %s687, 4
        %s691 = sadd.s32 %s689, %s690
        %s692 = smul.addr %s691, 4
        %s693 = scalar_lea.vmem %s8, %s692
        %s694 = sand.u32 %s263, 1
        %s695 = scalar_lea.sflag [#allocation10], %s694
        %s696 = sand.u32 %s263, 1
        %s697 = smul.addr %s696, 4
        %s698 = scalar_lea.vmem [#allocation9], %s697
        // Predicated region
        $region61: #{tpu_custom_call.1} parent=47 // pred_check
          %p699 = pneg %p217
        $region62: #{tpu_custom_call.1} parent=47 // pred_check_branch
          %701 = sbr.rel (%p699) target = $region64
        $region63: #{tpu_custom_call.1} parent=47 // pred_region
          %s703 = ssub.s32 64, 64
          %704 = vsyncadd %s682, %s703
          %s705 = sadd.s32 %s36, %s35
          %s706 = smul.addr %s705, 64
          %s707 = scalar_lea.hbm %s7, %s706
          %s709 = sshll.u32 %s685, 4
          %s710 = int_to_ptr.vmem [resolvable:$true] %s709
          %712 = dma.vmem_to_hbm [thread:$0]  %s710, 64, %s707, %s682
        $region64: #{tpu_custom_call.1} parent=47 // pred_fallthru
          _
        // Predicated region
        $region65: #{tpu_custom_call.1} parent=47 // pred_check
          %p713 = pneg %p245
        $region66: #{tpu_custom_call.1} parent=47 // pred_check_branch
          %715 = sbr.rel (%p713) target = $region68
        $region67: #{tpu_custom_call.1} parent=47 // pred_region
          _
        $region68: #{tpu_custom_call.1} parent=47 // pred_fallthru
          _
        // Predicated region
        $region69: #{tpu_custom_call.1} parent=47 // pred_check
          %p716 = pneg %p273
        $region70: #{tpu_custom_call.1} parent=47 // pred_check_branch
          %718 = sbr.rel (%p716) target = $region72
        $region71: #{tpu_custom_call.1} parent=47 // pred_region
          %s720 = ssub.s32 64, 64
          %721 = vsyncadd %s695, %s720
          %s722 = sadd.s32 %s36, %s35
          %s723 = smul.addr %s722, 64
          %s724 = scalar_lea.hbm %s9, %s723
          %s726 = sshll.u32 %s698, 4
          %s727 = int_to_ptr.vmem [resolvable:$true] %s726
          %729 = dma.vmem_to_hbm [thread:$0]  %s727, 64, %s724, %s695
        $region72: #{tpu_custom_call.1} parent=47 // pred_fallthru
          _
      $region48: #{tpu_custom_call.1} parent=5 // pred_fallthru
        _
      %p730 = scmp.le.s32.totalorder 2, %s26
      // Predicated region
      $region73: #{tpu_custom_call.1} parent=5 // pred_check
        %p731 = pneg %p730
      $region74: #{tpu_custom_call.1} parent=5 // pred_check_branch
        %733 = sbr.rel (%p731) target = $region76
      $region75: #{tpu_custom_call.1} parent=5 // pred_region
        %s734 = ssub.s32 %s26, 2
        // Predicated region
        $region77: #{tpu_custom_call.1} parent=75 // pred_check
          %p735 = pneg %p223
        $region78: #{tpu_custom_call.1} parent=75 // pred_check_branch
          %737 = sbr.rel (%p735) target = $region80
        $region79: #{tpu_custom_call.1} parent=75 // pred_region
          %s738 = sand.u32 %s208, 1
          %s739 = scalar_lea.sflag [#allocation4], %s738
          %s740 = sand.u32 %s208, 1
          %s741 = smul.addr %s740, 4
          %s742 = scalar_lea.vmem [#allocation8], %s741
          %743 = dma.done %s739, 64
        $region80: #{tpu_custom_call.1} parent=75 // pred_fallthru
          _
        // Predicated region
        $region81: #{tpu_custom_call.1} parent=75 // pred_check
          %p744 = pneg %p251
        $region82: #{tpu_custom_call.1} parent=75 // pred_check_branch
          %746 = sbr.rel (%p744) target = $region84
        $region83: #{tpu_custom_call.1} parent=75 // pred_region
          %p747 = scmp.lt.s32.totalorder %s37, 1
          %s748 = scalar_select %p747, %s37, 1
          %p749 = scmp.lt.s32.totalorder %s38, 0
          %s750 = scalar_select %p749, %s38, 0
          %s751 = smul.addr %s748, 4
          %s752 = sadd.s32 %s750, %s751
          %s753 = smul.addr %s752, 4
          %s754 = scalar_lea.vmem %s8, %s753
        $region84: #{tpu_custom_call.1} parent=75 // pred_fallthru
          _
        // Predicated region
        $region85: #{tpu_custom_call.1} parent=75 // pred_check
          %p755 = pneg %p279
        $region86: #{tpu_custom_call.1} parent=75 // pred_check_branch
          %757 = sbr.rel (%p755) target = $region88
        $region87: #{tpu_custom_call.1} parent=75 // pred_region
          %s758 = sand.u32 %s264, 1
          %s759 = scalar_lea.sflag [#allocation10], %s758
          %s760 = sand.u32 %s264, 1
          %s761 = smul.addr %s760, 4
          %s762 = scalar_lea.vmem [#allocation9], %s761
          %763 = dma.done %s759, 64
        $region88: #{tpu_custom_call.1} parent=75 // pred_fallthru
          _
      $region76: #{tpu_custom_call.1} parent=5 // pred_fallthru
        _
    $region6: #{tpu_custom_call.1} parent=1 // loop_footer
      %s30 = sadd.s32 1, %s26
    $region7: #{tpu_custom_call.1} parent=1 // loop_footer_branch
      %25 = sbr.rel target = $region3
    $region8: #{tpu_custom_call.1} parent=1 // loop_exit
      _
    %764 = vsyncpa [#allocation3], 1
    %s765 = scalar_lea.sflag [#allocation3], 1
    %766 = vsyncpa %s765, 1
    %767 = vsyncpa [#allocation6], 1
    %768 = vsyncpa [#allocation4], 1
    %s769 = scalar_lea.sflag [#allocation4], 1
    %770 = vsyncpa %s769, 1
    %771 = vsyncpa [#allocation10], 1
    %s772 = scalar_lea.sflag [#allocation10], 1
    %773 = vsyncpa %s772, 1

</llo_original>
